<compile_context>
chip_gen: v5e
topology: v5e:2x2
jax: 0.10.0
libtpu: 0.0.40
codegen_flags: <defaults>
</compile_context>

<pallas_src>
import functools

import jax
import jax.numpy as jnp
from jax.experimental import pallas as pl
from jax.experimental.pallas import tpu as pltpu

IN_FEATURES = 40
OUT_FEATURES = 30
SUBLANE = 8          # f32 sublane count
TM_MAX = 2048        # max batch-tile rows (sweep range 1024-4096; 2048 ~1.5 MiB VMEM)


def _round_up(n, m):
    return ((n + m - 1) // m) * m


def nest_mlp_kernel(x_ref, w_ref, b_ref, o_ref):
    # x: (tm, 40)  w: (40, 30)  b: (1, 30)  o: (tm, 30)
    # One MXU pass per tile, f32 accumulate, bias + ReLU on the VPU, cast last.
    y = jnp.dot(x_ref[...], w_ref[...], preferred_element_type=jnp.float32)
    y = y + b_ref[...]
    o_ref[...] = jnp.maximum(y, 0.0).astype(o_ref.dtype)


@functools.partial(jax.jit, static_argnames=("min_pallas_rows",))
def nest_mlp(x, w, b, *, min_pallas_rows=2048):
    """ReLU(x @ w + b).  x: (B, 40), w: (40, 30), b: (30,)."""
    B, in_f = x.shape
    out_f = w.shape[1]

    # Small-B fast path: a tiny fused XLA kernel beats any pallas_call launch.
    if B < min_pallas_rows:
        return jnp.maximum(x @ w + b, 0.0)

    # Batch tile: as large as reasonable, but always >= 2 grid steps so the
    # "parallel" batch axis can shard across both TensorCores on v7x.
    tm = min(TM_MAX, _round_up(pl.cdiv(B, 2), SUBLANE))
    grid = (pl.cdiv(B, tm),)

    itemsize = jnp.dtype(x.dtype).itemsize
    cost = pl.CostEstimate(
        flops=2 * B * in_f * out_f,
        transcendentals=0,
        bytes_accessed=(B * in_f + in_f * out_f + B * out_f) * itemsize,
    )

    return pl.pallas_call(
        nest_mlp_kernel,
        out_shape=jax.ShapeDtypeStruct((B, out_f), x.dtype),
        grid=grid,
        in_specs=[
            pl.BlockSpec((tm, in_f), lambda i: (i, 0)),      # stream x tiles
            pl.BlockSpec((in_f, out_f), lambda i: (0, 0)),   # W resident in VMEM
            pl.BlockSpec((1, out_f), lambda i: (0, 0)),      # b resident in VMEM
        ],
        out_specs=pl.BlockSpec((tm, out_f), lambda i: (i, 0)),
        compiler_params=pltpu.CompilerParams(
            dimension_semantics=("parallel",),   # independent rows
        ),
        cost_estimate=cost,
    )(x, w, b.reshape(1, out_f))


if __name__ == "__main__":
    key = jax.random.PRNGKey(0)
    k_x1, k_x2, k_x3, k_w, k_b = jax.random.split(key, 5)

    IN, OUT = IN_FEATURES, OUT_FEATURES  # NestMLP: Linear(40, 30) + ReLU

    # Deterministic init (mimics PyTorch uniform(-1/sqrt(IN), 1/sqrt(IN))).
    bound = float(1.0 / (IN ** 0.5))
    w = jax.random.uniform(k_w, (IN, OUT), jnp.float32, -bound, bound)
    b = jax.random.uniform(k_b, (OUT,), jnp.float32, -bound, bound)

    def ref(x):
        return jnp.maximum(x @ w + b, 0.0)

    # 1) Pallas path, clean grid: B=256 -> tm=128, 2 grid steps.
    x1 = jax.random.normal(k_x1, (256, IN), jnp.float32)
    out1 = jax.block_until_ready(nest_mlp(x1, w, b, min_pallas_rows=0))
    assert out1.shape == (256, OUT)
    assert jnp.allclose(out1, ref(x1), atol=1e-5, rtol=1e-5), "pallas mismatch"

    # 2) Pallas path, ragged last block: B=200 -> tm=104, blocks of 104 + 96.
    x2 = jax.random.normal(k_x2, (200, IN), jnp.float32)
    out2 = jax.block_until_ready(nest_mlp(x2, w, b, min_pallas_rows=0))
    assert out2.shape == (200, OUT)
    assert jnp.allclose(out2, ref(x2), atol=1e-5, rtol=1e-5), "ragged mismatch"

    # 3) Small-B fast path (default threshold skips Pallas for tiny batches).
    x3 = jax.random.normal(k_x3, (8, IN), jnp.float32)
    out3 = jax.block_until_ready(nest_mlp(x3, w, b))
    assert out3.shape == (8, OUT)
    assert jnp.allclose(out3, ref(x3), atol=1e-5, rtol=1e-5), "fast-path mismatch"

    print("KERNEL_OK")
</pallas_src>

<mosaic_0001>
module attributes {stable_mosaic.version = 11 : i64} {
  func.func @nest_mlp_kernel(%arg0: i32, %arg1: memref<128x40xf32, #tpu.memory_space<vmem>>, %arg2: memref<40x30xf32, #tpu.memory_space<vmem>>, %arg3: memref<1x30xf32, #tpu.memory_space<vmem>>, %arg4: memref<128x30xf32, #tpu.memory_space<vmem>>) attributes {dimension_semantics = [#tpu.dimension_semantics<parallel>], iteration_bounds = array<i64: 2>, scalar_prefetch = 0 : i64, scratch_operands = 0 : i64, tpu.core_type = #tpu.core_type<tc>, window_params = [{transform_indices = @transform_0, window_bounds = array<i64: 128, 40>}, {pipeline_mode = #tpu.pipeline_mode<synchronous>, transform_indices = @transform_1, window_bounds = array<i64: 40, 30>}, {pipeline_mode = #tpu.pipeline_mode<synchronous>, transform_indices = @transform_2, window_bounds = array<i64: 1, 30>}, {transform_indices = @transform_3, window_bounds = array<i64: 128, 30>}]} {
    %c0 = arith.constant 0 : index
    %c0_0 = arith.constant 0 : index
    %0 = vector.load %arg1[%c0, %c0_0] : memref<128x40xf32, #tpu.memory_space<vmem>>, vector<128x40xf32>
    %c0_1 = arith.constant 0 : index
    %c0_2 = arith.constant 0 : index
    %1 = vector.load %arg2[%c0_1, %c0_2] : memref<40x30xf32, #tpu.memory_space<vmem>>, vector<40x30xf32>
    %cst = arith.constant dense<0.000000e+00> : vector<128x30xf32>
    %2 = tpu.matmul %0, %1, %cst {dimension_numbers = #tpu.dot_dimension_numbers<[1], [0], [0], [1], [0, 0, 1, 1], [], []>} : vector<128x40xf32>, vector<40x30xf32>, vector<128x30xf32> -> vector<128x30xf32>
    %c0_3 = arith.constant 0 : index
    %c0_4 = arith.constant 0 : index
    %3 = vector.load %arg3[%c0_3, %c0_4] : memref<1x30xf32, #tpu.memory_space<vmem>>, vector<1x30xf32>
    %4 = vector.broadcast %3 : vector<1x30xf32> to vector<128x30xf32>
    %5 = arith.addf %2, %4 : vector<128x30xf32>
    %cst_5 = arith.constant 0.000000e+00 : f32
    %6 = vector.broadcast %cst_5 : f32 to vector<128x30xf32>
    %7 = arith.maximumf %5, %6 : vector<128x30xf32>
    %c0_6 = arith.constant 0 : index
    %c0_7 = arith.constant 0 : index
    %8 = vector.load %arg4[%c0_6, %c0_7] : memref<128x30xf32, #tpu.memory_space<vmem>>, vector<128x30xf32>
    tpu.vector_store %arg4[%c0_6, %c0_7], %7 {strides = array<i32>} : memref<128x30xf32, #tpu.memory_space<vmem>>, vector<128x30xf32>,
    return
  }
  func.func @transform_0(%arg0: i32) -> (i32, i32) {
    %c0_i32 = arith.constant 0 : i32
    %c0_i32_0 = arith.constant 0 : i32
    return %arg0, %c0_i32 : i32, i32
  }
  func.func @transform_1(%arg0: i32) -> (i32, i32) {
    %c0_i32 = arith.constant 0 : i32
    %c0_i32_0 = arith.constant 0 : i32
    %c0_i32_1 = arith.constant 0 : i32
    return %c0_i32, %c0_i32_0 : i32, i32
  }
  func.func @transform_2(%arg0: i32) -> (i32, i32) {
    %c0_i32 = arith.constant 0 : i32
    %c0_i32_0 = arith.constant 0 : i32
    %c0_i32_1 = arith.constant 0 : i32
    return %c0_i32, %c0_i32_0 : i32, i32
  }
  func.func @transform_3(%arg0: i32) -> (i32, i32) {
    %c0_i32 = arith.constant 0 : i32
    %c0_i32_0 = arith.constant 0 : i32
    return %arg0, %c0_i32 : i32, i32
  }
}

</mosaic_0001>

<llo_original>
// kernel: nest_mlp.1
$region0: #{nest_mlp.1}
  #allocation0 [shape = 'u32[]', space=smem, size = 0x4, offset = 0x4, fixed_abs, tag = 'smem constant byte address 0x4 - core index']
  #allocation1 [shape = 'u32[72,128]{1,0:T(1,128)}', space=vmem, size = 0x9000, scoped, tag = 'internal scratch']
  %s0 = inlined_call_operand.vmem [shape: f32[256,40], index: 0, kind: input, shape index: {}]
  %s1 = inlined_call_operand.vmem [shape: f32[40,30], index: 1, kind: input, shape index: {}]
  %s2 = inlined_call_operand.vmem [shape: f32[1,30], index: 2, kind: input, shape index: {}]
  %s3 = inlined_call_operand.vmem [shape: f32[256,30], index: 3, kind: output, shape index: {}]
  %s4 = sld [smem:[#allocation0]]
  $region45: #{nest_mlp.1} parent=0
    _
  %s6 = ssub.s32 1, %s4
  %s7 = scalar_select 0, %s6, %s4
  loop: start=0, step=1, limit=4
  $region2: #{nest_mlp.1} parent=0 // loop_pre_header
    _
  $region3: #{nest_mlp.1} parent=0 // loop_header
    %s9 = sphi 0, %s13
    %p10 = scmp.ge.s32.totalorder %s9, 4
    %s19 = sphi 0, %s21
    %s22 = sphi 0, %s19
    %s23 = sphi 0, %s22
    %s39 = sphi 0, %s23
    %s43 = sphi 0, %s43
    %s45 = sphi 0, %s43
    %s46 = sphi 0, %s45
    %s60 = sphi 0, %s46
    %s64 = sphi 0, %s64
    %s66 = sphi 0, %s64
    %s67 = sphi 0, %s66
    %s81 = sphi 0, %s67
    %s87 = sphi 0, %s89
    %s90 = sphi 0, %s87
    %s91 = sphi 0, %s90
    %s107 = sphi 0, %s91
  $region4: #{nest_mlp.1} parent=0 // loop_header_branch
    %12 = sbr.rel (%p10) target = $region8
  $region5: #{nest_mlp.1} parent=0 // loop_body
    %s14 = ssub.s32 %s9, 1
    %s15 = ssub.s32 %s9, 2
    %s16 = sadd.s32 %s9, 1
    %s17 = ssub.s32 %s9, %s16
    %p18 = scmp.eq.s32.totalorder %s17, 0
    %s20 = sadd.s32 %s19, 1
    %s21 = scalar_select %p18, %s19, %s20
    %p24 = pneg %p18
    %p25 = scmp.eq.s32.totalorder %s9, 1
    %p26 = por %p24, %p25
    %p27 = scmp.ne.s32.totalorder %s19, %s22
    %p28 = scmp.eq.s32.totalorder %s9, 0
    %p29 = por %p27, %p28
    %p30 = scmp.ne.s32.totalorder %s19, %s22
    %p31 = scmp.eq.s32.totalorder %s14, 1
    %p32 = por %p30, %p31
    %p33 = scmp.ne.s32.totalorder %s22, %s23
    %p34 = scmp.eq.s32.totalorder %s14, 0
    %p35 = por %p33, %p34
    %p36 = scmp.ne.s32.totalorder %s22, %s23
    %p37 = scmp.eq.s32.totalorder %s15, 1
    %p38 = por %p36, %p37
    %p40 = scmp.ne.s32.totalorder %s23, %s39
    %p41 = scmp.eq.s32.totalorder %s15, 0
    %p42 = por %p40, %p41
    %s44 = sadd.s32 %s43, 1
    %p47 = scmp.eq.s32.totalorder %s9, 1
    %p48 = scmp.ne.s32.totalorder %s43, %s45
    %p49 = scmp.eq.s32.totalorder %s9, 0
    %p50 = por %p48, %p49
    %p51 = scmp.ne.s32.totalorder %s43, %s45
    %p52 = scmp.eq.s32.totalorder %s14, 1
    %p53 = por %p51, %p52
    %p54 = scmp.ne.s32.totalorder %s45, %s46
    %p55 = scmp.eq.s32.totalorder %s14, 0
    %p56 = por %p54, %p55
    %p57 = scmp.ne.s32.totalorder %s45, %s46
    %p58 = scmp.eq.s32.totalorder %s15, 1
    %p59 = por %p57, %p58
    %p61 = scmp.ne.s32.totalorder %s46, %s60
    %p62 = scmp.eq.s32.totalorder %s15, 0
    %p63 = por %p61, %p62
    %s65 = sadd.s32 %s64, 1
    %p68 = scmp.eq.s32.totalorder %s9, 1
    %p69 = scmp.ne.s32.totalorder %s64, %s66
    %p70 = scmp.eq.s32.totalorder %s9, 0
    %p71 = por %p69, %p70
    %p72 = scmp.ne.s32.totalorder %s64, %s66
    %p73 = scmp.eq.s32.totalorder %s14, 1
    %p74 = por %p72, %p73
    %p75 = scmp.ne.s32.totalorder %s66, %s67
    %p76 = scmp.eq.s32.totalorder %s14, 0
    %p77 = por %p75, %p76
    %p78 = scmp.ne.s32.totalorder %s66, %s67
    %p79 = scmp.eq.s32.totalorder %s15, 1
    %p80 = por %p78, %p79
    %p82 = scmp.ne.s32.totalorder %s67, %s81
    %p83 = scmp.eq.s32.totalorder %s15, 0
    %p84 = por %p82, %p83
    %s85 = ssub.s32 %s9, %s16
    %p86 = scmp.eq.s32.totalorder %s85, 0
    %s88 = sadd.s32 %s87, 1
    %s89 = scalar_select %p86, %s87, %s88
    %p92 = pneg %p86
    %p93 = scmp.eq.s32.totalorder %s9, 1
    %p94 = por %p92, %p93
    %p95 = scmp.ne.s32.totalorder %s87, %s90
    %p96 = scmp.eq.s32.totalorder %s9, 0
    %p97 = por %p95, %p96
    %p98 = scmp.ne.s32.totalorder %s87, %s90
    %p99 = scmp.eq.s32.totalorder %s14, 1
    %p100 = por %p98, %p99
    %p101 = scmp.ne.s32.totalorder %s90, %s91
    %p102 = scmp.eq.s32.totalorder %s14, 0
    %p103 = por %p101, %p102
    %p104 = scmp.ne.s32.totalorder %s90, %s91
    %p105 = scmp.eq.s32.totalorder %s15, 1
    %p106 = por %p104, %p105
    %p108 = scmp.ne.s32.totalorder %s91, %s107
    %p109 = scmp.eq.s32.totalorder %s15, 0
    %p110 = por %p108, %p109
    %p111 = scmp.le.s32.totalorder 1, %s9
    %p112 = scmp.lt.s32.totalorder %s9, 3
    %p113 = pnand %p111, %p112
    %p114 = pneg %p113
    // Predicated region
    $region9: #{nest_mlp.1} parent=5 // pred_check
      _
    $region10: #{nest_mlp.1} parent=5 // pred_check_branch
      %116 = sbr.rel (%p113) target = $region12
    $region11: #{nest_mlp.1} parent=5 // pred_region
      %s117 = ssub.s32 %s9, 1
      // Predicated region
      $region13: #{nest_mlp.1} parent=11 // pred_check
        %p118 = pneg %p56
      $region14: #{nest_mlp.1} parent=11 // pred_check_branch
        %120 = sbr.rel (%p118) target = $region16
      $region15: #{nest_mlp.1} parent=11 // pred_region
        _
      $region16: #{nest_mlp.1} parent=11 // pred_fallthru
        _
      // Predicated region
      $region17: #{nest_mlp.1} parent=11 // pred_check
        %p121 = pneg %p77
      $region18: #{nest_mlp.1} parent=11 // pred_check_branch
        %123 = sbr.rel (%p121) target = $region20
      $region19: #{nest_mlp.1} parent=11 // pred_region
        _
      $region20: #{nest_mlp.1} parent=11 // pred_fallthru
        _
    $region12: #{nest_mlp.1} parent=5 // pred_fallthru
      _
    %p124 = scmp.lt.s32.totalorder %s9, 2
    // Predicated region
    $region21: #{nest_mlp.1} parent=5 // pred_check
      %p125 = pneg %p124
    $region22: #{nest_mlp.1} parent=5 // pred_check_branch
      %127 = sbr.rel (%p125) target = $region24
    $region23: #{nest_mlp.1} parent=5 // pred_region
      // Predicated region
      $region25: #{nest_mlp.1} parent=23 // pred_check
        %p128 = pneg %p29
      $region26: #{nest_mlp.1} parent=23 // pred_check_branch
        %130 = sbr.rel (%p128) target = $region28
      $region27: #{nest_mlp.1} parent=23 // pred_region
        %s131 = smul.u32 16, %s9
        %p132 = scmp.lt.s32.totalorder %s131, 31
        %s133 = scalar_select %p132, %s131, 31
        %s134 = smul.addr %s133, 8
        %s135 = scalar_lea.vmem %s0, %s134
        %s136 = smul.u32 16, %s9
      $region28: #{nest_mlp.1} parent=23 // pred_fallthru
        _
    $region24: #{nest_mlp.1} parent=5 // pred_fallthru
      _
    %p137 = scmp.le.s32.totalorder 1, %s9
    %p138 = scmp.lt.s32.totalorder %s9, 3
    %p139 = pnand %p137, %p138
    %p140 = pneg %p139
    // Predicated region
    $region29: #{nest_mlp.1} parent=5 // pred_check
      _
    $region30: #{nest_mlp.1} parent=5 // pred_check_branch
      %142 = sbr.rel (%p139) target = $region32
    $region31: #{nest_mlp.1} parent=5 // pred_region
      %s143 = ssub.s32 %s9, 1
      %s144 = smul.u32 16, %s14
      %p145 = scmp.lt.s32.totalorder %s144, 31
      %s146 = scalar_select %p145, %s144, 31
      %s147 = smul.addr %s146, 8
      %s148 = scalar_lea.vmem %s0, %s147
      %p149 = pneg %p35
      %p150 = pneg %p32
      %p151 = pneg %p56
      %p152 = pneg %p53
      %p153 = pneg %p77
      %p154 = pneg %p74
      %p155 = pneg %p103
      %p156 = pneg %p100
      %s157 = smul.u32 16, %s14
      %p158 = scmp.lt.s32.totalorder %s157, 31
      %s159 = scalar_select %p158, %s157, 31
      %s160 = smul.addr %s159, 8
      %s161 = scalar_lea.vmem %s3, %s160
      %s162 = smul.u32 16, %s14
      %p163 = scmp.lt.s32.totalorder %s162, 31
      %s164 = scalar_select %p163, %s162, 31
      %s165 = smul.addr %s164, 8
      %s166 = scalar_lea.vmem %s0, %s165
      %s167 = smul.u32 16, %s14
      %s168 = smul.u32 16, %s14
      %p169 = scmp.lt.s32.totalorder %s168, 31
      %s170 = scalar_select %p169, %s168, 31
      %s171 = smul.addr %s170, 8
      %s172 = scalar_lea.vmem %s3, %s171
      %s173 = smul.u32 16, %s14
      %v174 = vld [vmem:[%s166] sm:$0xff]
      %v175 = vld [vmem:[%s166 + $0x8] sm:$0xff]
      %v176 = vld [vmem:[%s166 + $0x10] sm:$0xff]
      %v177 = vld [vmem:[%s166 + $0x18] sm:$0xff]
      %v178 = vld [vmem:[%s166 + $0x20] sm:$0xff]
      %v179 = vld [vmem:[%s166 + $0x28] sm:$0xff]
      %v180 = vld [vmem:[%s166 + $0x30] sm:$0xff]
      %v181 = vld [vmem:[%s166 + $0x38] sm:$0xff]
      %v182 = vld [vmem:[%s166 + $0x40] sm:$0xff]
      %v183 = vld [vmem:[%s166 + $0x48] sm:$0xff]
      %v184 = vld [vmem:[%s166 + $0x50] sm:$0xff]
      %v185 = vld [vmem:[%s166 + $0x58] sm:$0xff]
      %v186 = vld [vmem:[%s166 + $0x60] sm:$0xff]
      %v187 = vld [vmem:[%s166 + $0x68] sm:$0xff]
      %v188 = vld [vmem:[%s166 + $0x70] sm:$0xff]
      %v189 = vld [vmem:[%s166 + $0x78] sm:$0xff]
      %v190 = vld [vmem:[%s1] sm:$0xff]
      %v191 = vld [vmem:[%s1 + $0x8] sm:$0xff]
      %v192 = vld [vmem:[%s1 + $0x10] sm:$0xff]
      %v193 = vld [vmem:[%s1 + $0x18] sm:$0xff]
      %v194 = vld [vmem:[%s1 + $0x20] sm:$0xff]
      %v195 = vld [vmem:[%s2] sm:$0x1]
      %v197 = vperm.slane %v195, 0
      %vm199 = vcmask 326656
      %v201 = vsel %vm199, %v174, 0
      %v204 = vsel %vm199, %v175, 0
      %v207 = vsel %vm199, %v176, 0
      %v210 = vsel %vm199, %v177, 0
      %v213 = vsel %vm199, %v178, 0
      %v216 = vsel %vm199, %v179, 0
      %v219 = vsel %vm199, %v180, 0
      %v222 = vsel %vm199, %v181, 0
      %v225 = vsel %vm199, %v182, 0
      %v228 = vsel %vm199, %v183, 0
      %v231 = vsel %vm199, %v184, 0
      %v234 = vsel %vm199, %v185, 0
      %v237 = vsel %vm199, %v186, 0
      %v240 = vsel %vm199, %v187, 0
      %v243 = vsel %vm199, %v188, 0
      %v246 = vsel %vm199, %v189, 0
      %248 = vmatpush.msra.mxu0 0.0
      %249 = vmatpush.msra.mxu0 0.0
      %250 = vmatpush.msra.mxu0 0.0
      %251 = vmatpush.msra.mxu0 0.0
      %252 = vmatpush.msra.mxu0 0.0
      %253 = vmatpush.msra.mxu0 0.0
      %254 = vmatpush.msra.mxu0 0.0
      %255 = vmatpush.msra.mxu0 0.0
      %256 = vmatpush.msra.mxu0 0.0
      %257 = vmatpush.msra.mxu0 0.0
      %258 = vmatpush.msra.mxu0 0.0
      %259 = vmatpush.msra.mxu0 %v194
      %260 = vmatpush.msra.mxu0 %v193
      %261 = vmatpush.msra.mxu0 %v192
      %262 = vmatpush.msra.mxu0 %v191
      %263 = vmatpush.msra.mxu0 %v190
      %264 = vmatmul.f32.gmra.mxu0 %v201
      %v265 = vpop.f32.mrf.mxu0
      %v266 = vadd.f32 %v197, %v265
      %267 = vmatmul.f32.gmra.mxu0 %v204
      %v268 = vpop.f32.mrf.mxu0
      %v269 = vadd.f32 %v197, %v268
      %270 = vmatmul.f32.gmra.mxu0 %v207
      %v271 = vpop.f32.mrf.mxu0
      %v272 = vadd.f32 %v197, %v271
      %273 = vmatmul.f32.gmra.mxu0 %v210
      %v274 = vpop.f32.mrf.mxu0
      %v275 = vadd.f32 %v197, %v274
      %276 = vmatmul.f32.gmra.mxu0 %v213
      %v277 = vpop.f32.mrf.mxu0
      %v278 = vadd.f32 %v197, %v277
      %279 = vmatmul.f32.gmra.mxu0 %v216
      %v280 = vpop.f32.mrf.mxu0
      %v281 = vadd.f32 %v197, %v280
      %282 = vmatmul.f32.gmra.mxu0 %v219
      %v283 = vpop.f32.mrf.mxu0
      %v284 = vadd.f32 %v197, %v283
      %285 = vmatmul.f32.gmra.mxu0 %v222
      %v286 = vpop.f32.mrf.mxu0
      %v287 = vadd.f32 %v197, %v286
      %288 = vmatmul.f32.gmra.mxu0 %v225
      %v289 = vpop.f32.mrf.mxu0
      %v290 = vadd.f32 %v197, %v289
      %291 = vmatmul.f32.gmra.mxu0 %v228
      %v292 = vpop.f32.mrf.mxu0
      %v293 = vadd.f32 %v197, %v292
      %294 = vmatmul.f32.gmra.mxu0 %v231
      %v295 = vpop.f32.mrf.mxu0
      %v296 = vadd.f32 %v197, %v295
      %297 = vmatmul.f32.gmra.mxu0 %v234
      %v298 = vpop.f32.mrf.mxu0
      %v299 = vadd.f32 %v197, %v298
      %300 = vmatmul.f32.gmra.mxu0 %v237
      %v301 = vpop.f32.mrf.mxu0
      %v302 = vadd.f32 %v197, %v301
      %303 = vmatmul.f32.gmra.mxu0 %v240
      %v304 = vpop.f32.mrf.mxu0
      %v305 = vadd.f32 %v197, %v304
      %306 = vmatmul.f32.gmra.mxu0 %v243
      %v307 = vpop.f32.mrf.mxu0
      %v308 = vadd.f32 %v197, %v307
      %309 = vmatmul.f32.gmra.mxu0 %v246
      %v310 = vpop.f32.mrf.mxu0
      %v311 = vadd.f32 %v197, %v310
      %312 = vdwg.mxu0
      %v313 = vmax.f32 %v266, 0.0
      %v314 = vmax.f32 %v269, 0.0
      %v315 = vmax.f32 %v272, 0.0
      %v316 = vmax.f32 %v275, 0.0
      %v317 = vmax.f32 %v278, 0.0
      %v318 = vmax.f32 %v281, 0.0
      %v319 = vmax.f32 %v284, 0.0
      %v320 = vmax.f32 %v287, 0.0
      %v321 = vmax.f32 %v290, 0.0
      %v322 = vmax.f32 %v293, 0.0
      %v323 = vmax.f32 %v296, 0.0
      %v324 = vmax.f32 %v299, 0.0
      %v325 = vmax.f32 %v302, 0.0
      %v326 = vmax.f32 %v305, 0.0
      %v327 = vmax.f32 %v308, 0.0
      %v328 = vmax.f32 %v311, 0.0
      %vm329 = vcmask 244736
      %330 = vst.msk [vmem:[%s172] sm:$0xff] %vm329, %v313
      %331 = vst.msk [vmem:[%s172 + $0x8] sm:$0xff] %vm329, %v314
      %332 = vst.msk [vmem:[%s172 + $0x10] sm:$0xff] %vm329, %v315
      %333 = vst.msk [vmem:[%s172 + $0x18] sm:$0xff] %vm329, %v316
      %334 = vst.msk [vmem:[%s172 + $0x20] sm:$0xff] %vm329, %v317
      %335 = vst.msk [vmem:[%s172 + $0x28] sm:$0xff] %vm329, %v318
      %336 = vst.msk [vmem:[%s172 + $0x30] sm:$0xff] %vm329, %v319
      %337 = vst.msk [vmem:[%s172 + $0x38] sm:$0xff] %vm329, %v320
      %338 = vst.msk [vmem:[%s172 + $0x40] sm:$0xff] %vm329, %v321
      %339 = vst.msk [vmem:[%s172 + $0x48] sm:$0xff] %vm329, %v322
      %340 = vst.msk [vmem:[%s172 + $0x50] sm:$0xff] %vm329, %v323
      %341 = vst.msk [vmem:[%s172 + $0x58] sm:$0xff] %vm329, %v324
      %342 = vst.msk [vmem:[%s172 + $0x60] sm:$0xff] %vm329, %v325
      %343 = vst.msk [vmem:[%s172 + $0x68] sm:$0xff] %vm329, %v326
      %344 = vst.msk [vmem:[%s172 + $0x70] sm:$0xff] %vm329, %v327
      %345 = vst.msk [vmem:[%s172 + $0x78] sm:$0xff] %vm329, %v328
      %s346 = smul.u32 16, %s14
      %p347 = scmp.lt.s32.totalorder %s346, 31
      %s348 = scalar_select %p347, %s346, 31
      %s349 = smul.addr %s348, 8
      %s350 = scalar_lea.vmem %s3, %s349
      // Predicated region
      $region33: #{nest_mlp.1} parent=31 // pred_check
        %p351 = pneg %p100
      $region34: #{nest_mlp.1} parent=31 // pred_check_branch
        %353 = sbr.rel (%p351) target = $region36
      $region35: #{nest_mlp.1} parent=31 // pred_region
        %s354 = smul.u32 16, %s14
      $region36: #{nest_mlp.1} parent=31 // pred_fallthru
        _
    $region32: #{nest_mlp.1} parent=5 // pred_fallthru
      _
    %p355 = scmp.le.s32.totalorder 2, %s9
    // Predicated region
    $region37: #{nest_mlp.1} parent=5 // pred_check
      %p356 = pneg %p355
    $region38: #{nest_mlp.1} parent=5 // pred_check_branch
      %358 = sbr.rel (%p356) target = $region40
    $region39: #{nest_mlp.1} parent=5 // pred_region
      %s359 = ssub.s32 %s9, 2
      // Predicated region
      $region41: #{nest_mlp.1} parent=39 // pred_check
        %p360 = pneg %p106
      $region42: #{nest_mlp.1} parent=39 // pred_check_branch
        %362 = sbr.rel (%p360) target = $region44
      $region43: #{nest_mlp.1} parent=39 // pred_region
        %s363 = smul.u32 16, %s15
        %p364 = scmp.lt.s32.totalorder %s363, 31
        %s365 = scalar_select %p364, %s363, 31
        %s366 = smul.addr %s365, 8
        %s367 = scalar_lea.vmem %s3, %s366
      $region44: #{nest_mlp.1} parent=39 // pred_fallthru
        _
    $region40: #{nest_mlp.1} parent=5 // pred_fallthru
      _
  $region6: #{nest_mlp.1} parent=0 // loop_footer
    %s13 = sadd.s32 1, %s9
  $region7: #{nest_mlp.1} parent=0 // loop_footer_branch
    %8 = sbr.rel target = $region3
  $region8: #{nest_mlp.1} parent=0 // loop_exit
    _

</llo_original>
